<compile_context>
chip_gen: v6e
topology: v6e:2x2x1
jax: 0.10.0
libtpu: 0.0.40
codegen_flags: <defaults>
</compile_context>

<pallas_src>
import functools

import jax
import jax.numpy as jnp
from jax.experimental import pallas as pl
from jax.experimental.pallas import tpu as pltpu


# Rows per grid step (on the 128-lane axis). Double-buffered VMEM footprint at 16384:
#   x block  (2, tm)  -> sublane-pad to 8  ->  8*tm*4 B = 512 KiB
#   out block(10, tm) -> sublane-pad to 16 -> 16*tm*4 B = 1 MiB
#   total ~ 2 * 1.5 MiB = 3 MiB  (weight/bias blocks are negligible)
_DEFAULT_TILE_M = 16384
# Below this many rows, a Pallas dispatch is pure overhead; use fused XLA path instead.
_MIN_ROWS_FOR_PALLAS = 4096


def _round_up(x: int, m: int) -> int:
    return ((x + m - 1) // m) * m


def _linear_k2_kernel(x_ref, w_ref, b_ref, o_ref):
    """out[c, m] = sum_k w[c, k] * x[k, m] + b[c]  for K == 2, lane-dense in m."""
    x = x_ref[...]                              # (2, tm)  f32, rows on lanes
    w = w_ref[...]                              # (C, 2)   f32, VMEM-resident
    b = b_ref[...]                              # (C, 1)   f32, VMEM-resident
    # Two rank-1 VPU updates: (C,1) lane-broadcast x (1,tm) sublane-broadcast -> (C,tm).
    acc = w[:, 0:1] * x[0:1, :] + w[:, 1:2] * x[1:2, :] + b
    o_ref[...] = acc.astype(o_ref.dtype)


@functools.partial(jax.jit, static_argnames=("tile_m", "force_pallas"))
def simple_model_forward(x, weight, bias, *, tile_m=_DEFAULT_TILE_M, force_pallas=False):
    """Pallas equivalent of SimpleModel.forward.

    x:      (B, S, 2) float32
    weight: (num_classes, 2) float32   (PyTorch nn.Linear weight layout)
    bias:   (num_classes,)  float32
    returns (B, S, num_classes) float32
    """
    assert x.ndim == 3, "SimpleModel expects a 3D input (B, S, 2)"
    B, S, K = x.shape
    C = weight.shape[0]
    assert weight.shape == (C, K)

    M = B * S
    x2d = x.reshape(M, K)                       # (M, K)

    if not force_pallas and M < _MIN_ROWS_FOR_PALLAS:
        # Kernel-launch overhead dwarfs the work at tiny M; let XLA fuse it.
        return (x2d @ weight.T + bias[None, :]).reshape(B, S, C)

    # Lane-dense layout: M on the 128-lane axis (layout plumbing done by XLA).
    x_t = x2d.T                                 # (K, M)
    b2d = bias.reshape(C, 1)                    # (C, 1)

    # Tile over M, multiple of 128 (lane width); ragged last block is clamped by Pallas.
    tm = min(tile_m, _round_up(M, 128))
    tm = _round_up(tm, 128)
    grid = (pl.cdiv(M, tm),)

    cost = pl.CostEstimate(
        flops=2 * M * K * C,
        transcendentals=0,
        bytes_accessed=(M * K + K * C + C + M * C) * 4,
    )

    out_t = pl.pallas_call(
        _linear_k2_kernel,
        out_shape=jax.ShapeDtypeStruct((C, M), x.dtype),
        grid=grid,
        in_specs=[
            pl.BlockSpec((K, tm), lambda i: (0, i)),   # x^T tile, streamed over M (lanes)
            pl.BlockSpec((C, K), lambda i: (0, 0)),    # weight: VMEM-resident
            pl.BlockSpec((C, 1), lambda i: (0, 0)),    # bias:   VMEM-resident
        ],
        out_specs=pl.BlockSpec((C, tm), lambda i: (0, i)),
        compiler_params=pltpu.CompilerParams(
            # Independent M tiles -> shard across both TensorCores on v7x megacore.
            dimension_semantics=("parallel",),
            # Explicit scoped-VMEM budget; real double-buffered footprint is ~3 MiB.
            vmem_limit_bytes=32 * 1024 * 1024,
        ),
        cost_estimate=cost,
    )(x_t, weight, b2d)

    # Transpose back to the module's (B, S, C) contract.
    return out_t.T.reshape(B, S, C)


if __name__ == "__main__":
    num_classes = 10
    K = 2

    key = jax.random.PRNGKey(0)
    kx, kw, kb, kx2 = jax.random.split(key, 4)

    # Deterministic nn.Linear-style init: U(-1/sqrt(in_features), 1/sqrt(in_features))
    bound = 1.0 / jnp.sqrt(jnp.float32(K))
    weight = jax.random.uniform(kw, (num_classes, K), jnp.float32, -bound, bound)
    bias = jax.random.uniform(kb, (num_classes,), jnp.float32, -bound, bound)

    # --- Small-shape test (single ragged block; exercises the kernel directly) ---
    B, S = 2, 8
    x = jax.random.normal(kx, (B, S, K), dtype=jnp.float32)
    out = simple_model_forward(x, weight, bias, force_pallas=True)
    out = jax.block_until_ready(out)
    ref = x @ weight.T + bias
    assert out.shape == (B, S, num_classes)
    assert jnp.allclose(out, ref, atol=1e-5), "mismatch vs reference (small)"

    # --- Multi-tile + ragged-tail test (M = 10000, tile_m=4096 -> 3 grid steps) ---
    B2, S2 = 2, 5000
    x2 = jax.random.normal(kx2, (B2, S2, K), dtype=jnp.float32)
    out2 = simple_model_forward(x2, weight, bias, tile_m=4096, force_pallas=True)
    out2 = jax.block_until_ready(out2)
    ref2 = x2 @ weight.T + bias
    assert out2.shape == (B2, S2, num_classes)
    assert jnp.allclose(out2, ref2, atol=1e-5), "mismatch vs reference (tiled)"

    print("KERNEL_OK")
</pallas_src>

<mosaic_0001>
module attributes {stable_mosaic.version = 11 : i64} {
  func.func @_linear_k2_kernel(%arg0: i32, %arg1: memref<2x128xf32, #tpu.memory_space<vmem>>, %arg2: memref<10x2xf32, #tpu.memory_space<vmem>>, %arg3: memref<10x1xf32, #tpu.memory_space<vmem>>, %arg4: memref<10x128xf32, #tpu.memory_space<vmem>>) attributes {dimension_semantics = [#tpu.dimension_semantics<parallel>], iteration_bounds = array<i64: 1>, scalar_prefetch = 0 : i64, scratch_operands = 0 : i64, tpu.core_type = #tpu.core_type<tc>, window_params = [{transform_indices = @transform_0, window_bounds = array<i64: 2, 128>}, {pipeline_mode = #tpu.pipeline_mode<synchronous>, transform_indices = @transform_1, window_bounds = array<i64: 10, 2>}, {pipeline_mode = #tpu.pipeline_mode<synchronous>, transform_indices = @transform_2, window_bounds = array<i64: 10, 1>}, {transform_indices = @transform_3, window_bounds = array<i64: 10, 128>}]} {
    %c0 = arith.constant 0 : index
    %c0_0 = arith.constant 0 : index
    %0 = vector.load %arg1[%c0, %c0_0] : memref<2x128xf32, #tpu.memory_space<vmem>>, vector<2x128xf32>
    %c0_1 = arith.constant 0 : index
    %c0_2 = arith.constant 0 : index
    %1 = vector.load %arg2[%c0_1, %c0_2] : memref<10x2xf32, #tpu.memory_space<vmem>>, vector<10x2xf32>
    %c0_3 = arith.constant 0 : index
    %c0_4 = arith.constant 0 : index
    %2 = vector.load %arg3[%c0_3, %c0_4] : memref<10x1xf32, #tpu.memory_space<vmem>>, vector<10x1xf32>
    %3 = vector.extract_strided_slice %1 {offsets = [0, 0], sizes = [10, 1], strides = [1, 1]} : vector<10x2xf32> to vector<10x1xf32>
    %4 = vector.extract_strided_slice %0 {offsets = [0, 0], sizes = [1, 128], strides = [1, 1]} : vector<2x128xf32> to vector<1x128xf32>
    %5 = vector.broadcast %3 : vector<10x1xf32> to vector<10x128xf32>
    %6 = vector.broadcast %4 : vector<1x128xf32> to vector<10x128xf32>
    %7 = arith.mulf %5, %6 : vector<10x128xf32>
    %8 = vector.extract_strided_slice %1 {offsets = [0, 1], sizes = [10, 1], strides = [1, 1]} : vector<10x2xf32> to vector<10x1xf32>
    %9 = vector.extract_strided_slice %0 {offsets = [1, 0], sizes = [1, 128], strides = [1, 1]} : vector<2x128xf32> to vector<1x128xf32>
    %10 = vector.broadcast %8 : vector<10x1xf32> to vector<10x128xf32>
    %11 = vector.broadcast %9 : vector<1x128xf32> to vector<10x128xf32>
    %12 = arith.mulf %10, %11 : vector<10x128xf32>
    %13 = arith.addf %7, %12 : vector<10x128xf32>
    %14 = vector.broadcast %2 : vector<10x1xf32> to vector<10x128xf32>
    %15 = arith.addf %13, %14 : vector<10x128xf32>
    %c0_5 = arith.constant 0 : index
    %c0_6 = arith.constant 0 : index
    %16 = vector.load %arg4[%c0_5, %c0_6] : memref<10x128xf32, #tpu.memory_space<vmem>>, vector<10x128xf32>
    tpu.vector_store %arg4[%c0_5, %c0_6], %15 {strides = array<i32>} : memref<10x128xf32, #tpu.memory_space<vmem>>, vector<10x128xf32>,
    return
  }
  func.func @transform_0(%arg0: i32) -> (i32, i32) {
    %c0_i32 = arith.constant 0 : i32
    %c0_i32_0 = arith.constant 0 : i32
    return %c0_i32, %arg0 : i32, i32
  }
  func.func @transform_1(%arg0: i32) -> (i32, i32) {
    %c0_i32 = arith.constant 0 : i32
    %c0_i32_0 = arith.constant 0 : i32
    %c0_i32_1 = arith.constant 0 : i32
    return %c0_i32, %c0_i32_0 : i32, i32
  }
  func.func @transform_2(%arg0: i32) -> (i32, i32) {
    %c0_i32 = arith.constant 0 : i32
    %c0_i32_0 = arith.constant 0 : i32
    %c0_i32_1 = arith.constant 0 : i32
    return %c0_i32, %c0_i32_0 : i32, i32
  }
  func.func @transform_3(%arg0: i32) -> (i32, i32) {
    %c0_i32 = arith.constant 0 : i32
    %c0_i32_0 = arith.constant 0 : i32
    return %c0_i32, %arg0 : i32, i32
  }
}

</mosaic_0001>

<llo_original>
// kernel: simple_model_forward.1
$region0: #{simple_model_forward.1}
  #allocation0 [shape = 'u32[]', space=smem, size = 0x4, offset = 0x4, fixed_abs, tag = 'smem constant byte address 0x4 - core index']
  #allocation1 [shape = 'u32[144,128]{1,0:T(1,128)}', space=vmem, size = 0x12000, scoped, tag = 'internal scratch']
  %s0 = inlined_call_operand.vmem [shape: f32[2,16], index: 0, kind: input, shape index: {}]
  %s1 = inlined_call_operand.vmem [shape: f32[10,2], index: 1, kind: input, shape index: {}]
  %s2 = inlined_call_operand.vmem [shape: f32[10,1], index: 2, kind: input, shape index: {}]
  %s3 = inlined_call_operand.vmem [shape: f32[10,16], index: 3, kind: output, shape index: {}]
  %s4 = sld [smem:[#allocation0]]
  $region22: #{simple_model_forward.1} parent=0
    _
  %s6 = ssub.s32 1, %s4
  %s7 = scalar_select 0, %s6, %s4
  // Predicated region
  $region2: #{simple_model_forward.1} parent=0 // pred_check
    _
  $region3: #{simple_model_forward.1} parent=0 // pred_check_branch
    %9 = sbr.rel (0) target = $region5
  $region4: #{simple_model_forward.1} parent=0 // pred_region
    _
  $region5: #{simple_model_forward.1} parent=0 // pred_fallthru
    _
  // Predicated region
  $region6: #{simple_model_forward.1} parent=0 // pred_check
    _
  $region7: #{simple_model_forward.1} parent=0 // pred_check_branch
    %11 = sbr.rel (0) target = $region9
  $region8: #{simple_model_forward.1} parent=0 // pred_region
    _
  $region9: #{simple_model_forward.1} parent=0 // pred_fallthru
    _
  // Predicated region
  $region10: #{simple_model_forward.1} parent=0 // pred_check
    _
  $region11: #{simple_model_forward.1} parent=0 // pred_check_branch
    %13 = sbr.rel (0) target = $region13
  $region12: #{simple_model_forward.1} parent=0 // pred_region
    _
  $region13: #{simple_model_forward.1} parent=0 // pred_fallthru
    _
  %v14 = vld [vmem:[%s0] sm:$0x3]
  %v15 = vld [vmem:[%s1] sm:$0xff]
  %v16 = vld [vmem:[%s1 + $0x8] sm:$0x3]
  %v17 = vld [vmem:[%s2] sm:$0xff]
  %v18 = vld [vmem:[%s2 + $0x8] sm:$0x3]
  %20 = vset.pattern.permute.xlu0 0
  %21 = vperm.xlu0 %20, %v15
  %v22 = vpop.permute.xlu0 %21
  %25 = vset.pattern.permute.xlu0 0
  %26 = vperm.xlu0 %25, %v16
  %v27 = vpop.permute.xlu0 %26
  %v29 = vlaneseq
  %v30 = vshrl.u32 %v29, 7
  %v31 = vsub.s32 0, %v30
  %v32 = vrot.slane %v14, %v31
  %v33 = vmul.f32 %v22, %v32
  %v34 = vmul.f32 %v27, %v32
  %35 = vset.pattern.permute.xlu0 1
  %36 = vperm.xlu0 %35, %v15
  %v37 = vpop.permute.xlu0 %36
  %39 = vset.pattern.permute.xlu0 1
  %40 = vperm.xlu0 %39, %v16
  %v41 = vpop.permute.xlu0 %40
  %v43 = vlaneseq
  %v44 = vshrl.u32 %v43, 7
  %v45 = vsub.s32 1, %v44
  %v46 = vrot.slane %v14, %v45
  %v47 = vmul.f32 %v37, %v46
  %v48 = vmul.f32 %v41, %v46
  %v49 = vadd.f32 %v33, %v47
  %v50 = vadd.f32 %v34, %v48
  %52 = vset.pattern.permute.xlu0 0
  %53 = vperm.xlu0 %52, %v17
  %v54 = vpop.permute.xlu0 %53
  %57 = vset.pattern.permute.xlu0 0
  %58 = vperm.xlu0 %57, %v18
  %v59 = vpop.permute.xlu0 %58
  %v61 = vadd.f32 %v49, %v54
  %v62 = vadd.f32 %v50, %v59
  %63 = vst [vmem:[%s3] sm:$0xff] %v61
  %64 = vst [vmem:[%s3 + $0x8] sm:$0x3] %v62
  // Predicated region
  $region14: #{simple_model_forward.1} parent=0 // pred_check
    _
  $region15: #{simple_model_forward.1} parent=0 // pred_check_branch
    %66 = sbr.rel (0) target = $region17
  $region16: #{simple_model_forward.1} parent=0 // pred_region
    _
  $region17: #{simple_model_forward.1} parent=0 // pred_fallthru
    _
  // Predicated region
  $region18: #{simple_model_forward.1} parent=0 // pred_check
    _
  $region19: #{simple_model_forward.1} parent=0 // pred_check_branch
    %68 = sbr.rel (0) target = $region21
  $region20: #{simple_model_forward.1} parent=0 // pred_region
    _
  $region21: #{simple_model_forward.1} parent=0 // pred_fallthru
    _

</llo_original>
